<compile_context>
chip_gen: v6e
topology: v6e:2x2x1
jax: 0.10.0
libtpu: 0.0.40
codegen_flags: <defaults>
</compile_context>

<pallas_src>
import jax
import jax.numpy as jnp
from jax.experimental import pallas as pl
from jax.experimental.pallas import tpu as pltpu

_LANE = 128         # candidate-axis bucket (TPU lane width) -> lane-dense vst
_SUBLANE = 8        # batch rows padded to a multiple of this
_MAX_BLOCK_B = 128  # max batch rows per grid step


def _gdpolicy_head_kernel(n_valid_ref, g_ref, w_ref, b_ref, ct_ref, logp_ref):
    """One batch block: decoder tanh layer + clause scores + log-softmax.

    n_valid_ref : SMEM (1,)  int32 -- number of real (unpadded) candidate clauses
    g_ref       : VMEM [TB,H] bf16 -- graph embeddings (rows of this batch block)
    w_ref       : VMEM [H,H]  bf16 -- decoder weight (resident across grid steps)
    b_ref       : VMEM [1,H]  f32  -- decoder bias (resident)
    ct_ref      : VMEM [H,Np] f32  -- candidate clause embeddings, pre-transposed
    logp_ref    : VMEM [TB,Np] f32 -- log-softmax over candidate clauses
    """
    # decoder: bf16 MXU matmul with f32 accumulation, then f32 bias + tanh (EUP)
    h = jnp.dot(g_ref[...], w_ref[...], preferred_element_type=jnp.float32)
    h = jnp.tanh(h + b_ref[...])
    # clause scores: f32 matmul (tiny here; keeps near-tied clause ranks exact)
    scores = jnp.dot(h, ct_ref[...], preferred_element_type=jnp.float32)
    # mask padded candidate lanes with a large-negative *literal* (not a captured
    # jnp constant), then numerically-stable log-softmax along the lanes.
    lane = jax.lax.broadcasted_iota(jnp.int32, scores.shape, 1)
    scores = jnp.where(lane < n_valid_ref[0], scores, -1e30)
    m = jnp.max(scores, axis=-1, keepdims=True)
    e = jnp.exp(scores - m)
    logp_ref[...] = scores - m - jnp.log(jnp.sum(e, axis=-1, keepdims=True))


def prepare_gdpolicy_params(w, b, c):
    """Once-per-episode parameter prep (hoisted out of the per-step path).

    w : [H, H] decoder weight;  b : [1, H] decoder bias;  c : [N, H] clause embs.
    Returns (w_bf16, b_f32, ct_f32 padded to [H, N_pad], n).
    """
    n, hdim = c.shape
    assert w.shape == (hdim, hdim) and b.shape == (1, hdim)
    n_pad = ((n + _LANE - 1) // _LANE) * _LANE           # bucketed lane padding
    w_bf = w.astype(jnp.bfloat16)
    b_f32 = b.astype(jnp.float32)
    ct = jnp.zeros((hdim, n_pad), jnp.float32).at[:, :n].set(c.T.astype(jnp.float32))
    return w_bf, b_f32, ct, n


def gdpolicy_log_probs(g, params):
    """g: [B, H] graph embeddings -> [B, N] f32 log-softmax over candidate clauses."""
    w_bf, b_f32, ct, n = params
    bsz, hdim = g.shape
    assert ct.shape[0] == hdim
    n_pad = ct.shape[1]

    # One big batch block (up to 128 rows); at demo sizes grid degenerates to
    # (1,), killing per-step pipeline overhead while keeping W / C^T resident.
    b_pad = ((bsz + _SUBLANE - 1) // _SUBLANE) * _SUBLANE
    if b_pad <= _MAX_BLOCK_B:
        block_b = b_pad
    else:
        block_b = _MAX_BLOCK_B
        b_pad = ((bsz + block_b - 1) // block_b) * block_b

    # pad + cast g to bf16 once here (the pad op materializes it anyway)
    g_p = jnp.zeros((b_pad, hdim), jnp.bfloat16).at[:bsz].set(g.astype(jnp.bfloat16))
    n_valid = jnp.asarray([n], dtype=jnp.int32)          # runtime scalar -> SMEM

    out = pl.pallas_call(
        _gdpolicy_head_kernel,
        out_shape=jax.ShapeDtypeStruct((b_pad, n_pad), jnp.float32),
        grid_spec=pltpu.PrefetchScalarGridSpec(
            num_scalar_prefetch=1,
            grid=(b_pad // block_b,),
            in_specs=[
                pl.BlockSpec((block_b, hdim), lambda i, n_ref: (i, 0)),  # g rows
                pl.BlockSpec((hdim, hdim), lambda i, n_ref: (0, 0)),     # W resident
                pl.BlockSpec((1, hdim), lambda i, n_ref: (0, 0)),        # bias resident
                pl.BlockSpec((hdim, n_pad), lambda i, n_ref: (0, 0)),    # C^T resident
            ],
            out_specs=pl.BlockSpec((block_b, n_pad), lambda i, n_ref: (i, 0)),
        ),
        compiler_params=pltpu.CompilerParams(
            dimension_semantics=("parallel",),
            vmem_limit_bytes=32 * 1024 * 1024,
        ),
    )(n_valid, g_p, w_bf, b_f32, ct)
    # TODO(synk): at production H / clause counts, tile the candidate axis
    # (grid=(B_blocks, N_blocks), N marked "arbitrary") with an online
    # log-softmax (running max / denom in f32 VMEM scratch, finalize on the last
    # N block via pl.when) and single-buffer the constant-index residents;
    # resident C^T plus per-core duplication will not fit v7x's 64 MiB VMEM.
    return out[:bsz, :n]


def gdpolicy_forward(prob_history, g, params, phase="train", key=None):
    """Mimics GDPolicy.forward tensor semantics:
    prob, clause = get_prob_clause(...); prob_history = cat([prob_history, prob])."""
    logp = gdpolicy_log_probs(g, params)[0]            # [N] log-softmax
    if phase == "train":
        clause = jax.random.categorical(key, logp)     # consumes log-probs directly
    else:
        clause = jnp.argmax(logp)
    prob = jnp.exp(logp[clause])[None]                 # [1], like the torch prob slice
    if prob_history.size:                              # torch.cat branch
        prob_history = jnp.concatenate([prob_history, prob])
    else:                                              # empty-history branch
        prob_history = prob
    # TODO(synk): env.clauses.append / env.step() / env.is_finished() and the
    # reward_history bookkeeping are Python env side-effects with no tensor
    # (or Pallas) equivalent; intentionally not modeled here.
    return prob_history, clause


if __name__ == "__main__":
    hidden_dim = 32      # cmd_args.hidden_dim analogue
    num_clauses = 8      # candidate clauses scored by the policy head
    batch = 16           # batched graph states (exercises the padded batch block)

    key = jax.random.PRNGKey(0)
    kg, kgb, kw, kb, kc, ks1, ks2 = jax.random.split(key, 7)

    # deterministic synthetic parameters / embeddings (no checkpoint loading)
    g = jax.random.normal(kg, (1, hidden_dim), jnp.float32)             # single graph
    g_batch = jax.random.normal(kgb, (batch, hidden_dim), jnp.float32)  # batched graphs
    w_dec = jax.random.normal(kw, (hidden_dim, hidden_dim), jnp.float32) * 0.1
    b_dec = jax.random.normal(kb, (1, hidden_dim), jnp.float32) * 0.1
    cand = jax.random.normal(kc, (num_clauses, hidden_dim), jnp.float32)

    # once-per-episode param prep (W cast, C^T transpose+pad) -- NOT per step
    params = prepare_gdpolicy_params(w_dec, b_dec, cand)

    prob_history = jnp.zeros((0,), dtype=jnp.float32)    # Variable(torch.Tensor())

    # two forward steps exercise both torch.cat branches + both phases
    prob_history, clause0 = gdpolicy_forward(prob_history, g, params,
                                             phase="train", key=ks1)
    prob_history, clause1 = gdpolicy_forward(prob_history, g, params,
                                             phase="test", key=ks2)
    jax.block_until_ready(prob_history)

    # batched kernel check against a pure-JAX reference (bf16 decoder tolerance)
    logp = jax.block_until_ready(gdpolicy_log_probs(g_batch, params))
    probs = jnp.exp(logp)
    h_ref = jnp.tanh(g_batch @ w_dec + b_dec)
    probs_ref = jax.nn.softmax(h_ref @ cand.T, axis=-1)

    assert prob_history.shape == (2,)
    assert int(clause0) >= 0 and int(clause1) >= 0
    assert logp.shape == (batch, num_clauses)
    assert bool(jnp.all(jnp.abs(jnp.sum(probs, axis=-1) - 1.0) < 1e-5))
    assert bool(jnp.max(jnp.abs(probs - probs_ref)) < 5e-2)
    print("KERNEL_OK")
</pallas_src>

<mosaic_0001>
module attributes {stable_mosaic.version = 11 : i64} {
  func.func @_gdpolicy_head_kernel(%arg0: i32, %arg1: memref<1xi32, #tpu.memory_space<smem>>, %arg2: memref<8x32xbf16, #tpu.memory_space<vmem>>, %arg3: memref<32x32xbf16, #tpu.memory_space<vmem>>, %arg4: memref<1x32xf32, #tpu.memory_space<vmem>>, %arg5: memref<32x128xf32, #tpu.memory_space<vmem>>, %arg6: memref<8x128xf32, #tpu.memory_space<vmem>>) attributes {dimension_semantics = [#tpu.dimension_semantics<parallel>], iteration_bounds = array<i64: 1>, scalar_prefetch = 1 : i64, scratch_operands = 0 : i64, tpu.core_type = #tpu.core_type<tc>, window_params = [{transform_indices = @transform_0, window_bounds = array<i64: 8, 32>}, {pipeline_mode = #tpu.pipeline_mode<synchronous>, transform_indices = @transform_1, window_bounds = array<i64: 32, 32>}, {pipeline_mode = #tpu.pipeline_mode<synchronous>, transform_indices = @transform_2, window_bounds = array<i64: 1, 32>}, {pipeline_mode = #tpu.pipeline_mode<synchronous>, transform_indices = @transform_3, window_bounds = array<i64: 32, 128>}, {transform_indices = @transform_4, window_bounds = array<i64: 8, 128>}]} {
    %c0 = arith.constant 0 : index
    %c0_0 = arith.constant 0 : index
    %0 = vector.load %arg2[%c0, %c0_0] : memref<8x32xbf16, #tpu.memory_space<vmem>>, vector<8x32xbf16>
    %c0_1 = arith.constant 0 : index
    %c0_2 = arith.constant 0 : index
    %1 = vector.load %arg3[%c0_1, %c0_2] : memref<32x32xbf16, #tpu.memory_space<vmem>>, vector<32x32xbf16>
    %cst = arith.constant dense<0.000000e+00> : vector<8x32xf32>
    %2 = tpu.matmul %0, %1, %cst {dimension_numbers = #tpu.dot_dimension_numbers<[1], [0], [0], [1], [0, 0, 1, 1], [], []>} : vector<8x32xbf16>, vector<32x32xbf16>, vector<8x32xf32> -> vector<8x32xf32>
    %c0_3 = arith.constant 0 : index
    %c0_4 = arith.constant 0 : index
    %3 = vector.load %arg4[%c0_3, %c0_4] : memref<1x32xf32, #tpu.memory_space<vmem>>, vector<1x32xf32>
    %4 = vector.broadcast %3 : vector<1x32xf32> to vector<8x32xf32>
    %5 = arith.addf %2, %4 : vector<8x32xf32>
    %6 = math.tanh %5 : vector<8x32xf32>
    %c0_5 = arith.constant 0 : index
    %c0_6 = arith.constant 0 : index
    %7 = vector.load %arg5[%c0_5, %c0_6] : memref<32x128xf32, #tpu.memory_space<vmem>>, vector<32x128xf32>
    %cst_7 = arith.constant dense<0.000000e+00> : vector<8x128xf32>
    %8 = tpu.matmul %6, %7, %cst_7 {dimension_numbers = #tpu.dot_dimension_numbers<[1], [0], [0], [1], [0, 0, 1, 1], [], []>} : vector<8x32xf32>, vector<32x128xf32>, vector<8x128xf32> -> vector<8x128xf32>
    %9 = tpu.iota {dimensions = array<i32: 1>} : vector<8x128xi32>
    %c0_8 = arith.constant 0 : index
    %10 = memref.load %arg1[%c0_8] : memref<1xi32, #tpu.memory_space<smem>>
    %11 = vector.broadcast %10 : i32 to vector<8x128xi32>
    %12 = arith.cmpi slt, %9, %11 : vector<8x128xi32>
    %cst_9 = arith.constant -1.000000e+30 : f32
    %13 = vector.broadcast %cst_9 : f32 to vector<8x128xf32>
    %14 = arith.select %12, %8, %13 : vector<8x128xi1>, vector<8x128xf32>
    %cst_10 = arith.constant dense<0xFF800000> : vector<8xf32>
    %15 = vector.multi_reduction <maximumf>, %14, %cst_10 [1] : vector<8x128xf32> to vector<8xf32>
    %16 = vector.shape_cast %15 : vector<8xf32> to vector<8x1xf32>
    %17 = vector.broadcast %16 : vector<8x1xf32> to vector<8x128xf32>
    %18 = arith.subf %14, %17 : vector<8x128xf32>
    %19 = math.exp %18 : vector<8x128xf32>
    %20 = vector.broadcast %16 : vector<8x1xf32> to vector<8x128xf32>
    %21 = arith.subf %14, %20 : vector<8x128xf32>
    %cst_11 = arith.constant dense<0.000000e+00> : vector<8xf32>
    %22 = vector.multi_reduction <add>, %19, %cst_11 [1] : vector<8x128xf32> to vector<8xf32>
    %23 = vector.shape_cast %22 : vector<8xf32> to vector<8x1xf32>
    %24 = math.log %23 : vector<8x1xf32>
    %25 = vector.broadcast %24 : vector<8x1xf32> to vector<8x128xf32>
    %26 = arith.subf %21, %25 : vector<8x128xf32>
    %c0_12 = arith.constant 0 : index
    %c0_13 = arith.constant 0 : index
    %27 = vector.load %arg6[%c0_12, %c0_13] : memref<8x128xf32, #tpu.memory_space<vmem>>, vector<8x128xf32>
    tpu.vector_store %arg6[%c0_12, %c0_13], %26 {strides = array<i32>} : memref<8x128xf32, #tpu.memory_space<vmem>>, vector<8x128xf32>,
    return
  }
  func.func @transform_0(%arg0: i32, %arg1: memref<1xi32, #tpu.memory_space<smem>>) -> (i32, i32) {
    %c0_i32 = arith.constant 0 : i32
    %c0_i32_0 = arith.constant 0 : i32
    return %arg0, %c0_i32 : i32, i32
  }
  func.func @transform_1(%arg0: i32, %arg1: memref<1xi32, #tpu.memory_space<smem>>) -> (i32, i32) {
    %c0_i32 = arith.constant 0 : i32
    %c0_i32_0 = arith.constant 0 : i32
    %c0_i32_1 = arith.constant 0 : i32
    return %c0_i32, %c0_i32_0 : i32, i32
  }
  func.func @transform_2(%arg0: i32, %arg1: memref<1xi32, #tpu.memory_space<smem>>) -> (i32, i32) {
    %c0_i32 = arith.constant 0 : i32
    %c0_i32_0 = arith.constant 0 : i32
    %c0_i32_1 = arith.constant 0 : i32
    return %c0_i32, %c0_i32_0 : i32, i32
  }
  func.func @transform_3(%arg0: i32, %arg1: memref<1xi32, #tpu.memory_space<smem>>) -> (i32, i32) {
    %c0_i32 = arith.constant 0 : i32
    %c0_i32_0 = arith.constant 0 : i32
    %c0_i32_1 = arith.constant 0 : i32
    return %c0_i32, %c0_i32_0 : i32, i32
  }
  func.func @transform_4(%arg0: i32, %arg1: memref<1xi32, #tpu.memory_space<smem>>) -> (i32, i32) {
    %c0_i32 = arith.constant 0 : i32
    %c0_i32_0 = arith.constant 0 : i32
    return %arg0, %c0_i32 : i32, i32
  }
}

</mosaic_0001>

<llo_original>
// kernel: tpu_custom_call.1
$region0: #{tpu_custom_call.1}
  #allocation0 [shape = 'u32[]', space=smem, size = 0x4, offset = 0x4, fixed_abs, tag = 'smem constant byte address 0x4 - core index']
  #allocation1 [shape = 'u32[144,128]{1,0:T(1,128)}', space=vmem, size = 0x12000, scoped, tag = 'internal scratch']
  #allocation2 [shape = 's32[1]{0}', space=sflag, size = 0x4, scoped, tag = 'scoped memory for tpu_custom_call.1']
  #allocation3 [shape = 's32[1]{0:T(128)S(6)}', space=smem, size = 0x200, scoped, tag = 'prefetched SMEM operand 0']
  %s0 = inlined_call_operand.<no memory space> [shape: s32[1], index: 0, kind: input, shape index: {}]
  %s1 = inlined_call_operand.hbm [shape: bf16[8,32], index: 1, kind: input, shape index: {}]
  %s2 = inlined_call_operand.hbm [shape: bf16[32,32], index: 2, kind: input, shape index: {}]
  %s3 = inlined_call_operand.vmem [shape: f32[1,32], index: 3, kind: input, shape index: {}]
  %s4 = inlined_call_operand.hbm [shape: f32[32,128], index: 4, kind: input, shape index: {}]
  %s5 = inlined_call_operand.hbm [shape: f32[8,128], index: 5, kind: output, shape index: {}]
  %s6 = sld [smem:[#allocation0]]
  $region38: #{tpu_custom_call.1} parent=0
    _
  %s8 = ssub.s32 1, %s6
  %s9 = scalar_select 0, %s8, %s6
  %10 = sst [smem:[#allocation3]] %s0
  $region1: #{tpu_custom_call.1} parent=0
    #allocation4 [shape = 'u8[2048]{0}', space=vmem, size = 0x800, scoped, tag = 'input window, operand 1, single buffered']
    #allocation5 [shape = 's32[1]{0}', space=sflag, size = 0x4, scoped, tag = 'scoped memory for tpu_custom_call.1']
    #allocation6 [shape = 's32[1]{0}', space=sflag, size = 0x4, scoped, tag = 'scoped memory for tpu_custom_call.1']
    #allocation7 [shape = 'u8[8192]{0}', space=vmem, size = 0x2000, scoped, tag = 'input window, operand 2, single buffered']
    #allocation8 [shape = 's32[1]{0}', space=sflag, size = 0x4, scoped, tag = 'scoped memory for tpu_custom_call.1']
    #allocation9 [shape = 'u8[16384]{0}', space=vmem, size = 0x4000, scoped, tag = 'input window, operand 4, single buffered']
    #allocation10 [shape = 'u8[4096]{0}', space=vmem, size = 0x1000, scoped, tag = 'output window, operand 0, single buffered']
    %11 = vsyncpa [#allocation5], 0
    %12 = vsyncpa [#allocation8], 0
    %13 = vsyncpa [#allocation6], 0
    // Predicated region
    $region2: #{tpu_custom_call.1} parent=1 // pred_check
      _
    $region3: #{tpu_custom_call.1} parent=1 // pred_check_branch
      %15 = sbr.rel (0) target = $region5
    $region4: #{tpu_custom_call.1} parent=1 // pred_region
      %s17 = ssub.s32 64, 64
      %18 = vsyncadd [#allocation5], %s17
      %s20 = sshll.u32 [#allocation4], 4
      %s21 = int_to_ptr.vmem [resolvable:$true] %s20
      %23 = dma.hbm_to_vmem [thread:$0]  %s1, 64, %s21, [#allocation5]
    $region5: #{tpu_custom_call.1} parent=1 // pred_fallthru
      _
    // Predicated region
    $region6: #{tpu_custom_call.1} parent=1 // pred_check
      _
    $region7: #{tpu_custom_call.1} parent=1 // pred_check_branch
      %25 = sbr.rel (0) target = $region9
    $region8: #{tpu_custom_call.1} parent=1 // pred_region
      %s27 = ssub.s32 256, 256
      %28 = vsyncadd [#allocation8], %s27
      %s29 = sshll.u32 [#allocation7], 4
      %s30 = int_to_ptr.vmem [resolvable:$true] %s29
      %35 = dma.hbm_to_vmem [thread:$0]  %s2, 256, %s30, [#allocation8], 64, 64, 4
    $region9: #{tpu_custom_call.1} parent=1 // pred_fallthru
      _
    // Predicated region
    $region10: #{tpu_custom_call.1} parent=1 // pred_check
      _
    $region11: #{tpu_custom_call.1} parent=1 // pred_check_branch
      %37 = sbr.rel (0) target = $region13
    $region12: #{tpu_custom_call.1} parent=1 // pred_region
      _
    $region13: #{tpu_custom_call.1} parent=1 // pred_fallthru
      _
    // Predicated region
    $region14: #{tpu_custom_call.1} parent=1 // pred_check
      _
    $region15: #{tpu_custom_call.1} parent=1 // pred_check_branch
      %39 = sbr.rel (0) target = $region17
    $region16: #{tpu_custom_call.1} parent=1 // pred_region
      %s41 = ssub.s32 512, 512
      %42 = vsyncadd [#allocation8], %s41
      %s43 = sshll.u32 [#allocation9], 4
      %s44 = int_to_ptr.vmem [resolvable:$true] %s43
      %49 = dma.hbm_to_vmem [thread:$0]  %s4, 512, %s44, [#allocation8], 128, 128, 8
    $region17: #{tpu_custom_call.1} parent=1 // pred_fallthru
      _
    // Predicated region
    $region18: #{tpu_custom_call.1} parent=1 // pred_check
      _
    $region19: #{tpu_custom_call.1} parent=1 // pred_check_branch
      %51 = sbr.rel (0) target = $region21
    $region20: #{tpu_custom_call.1} parent=1 // pred_region
      %52 = dma.done [#allocation5], 64
    $region21: #{tpu_custom_call.1} parent=1 // pred_fallthru
      _
    // Predicated region
    $region22: #{tpu_custom_call.1} parent=1 // pred_check
      _
    $region23: #{tpu_custom_call.1} parent=1 // pred_check_branch
      %54 = sbr.rel (0) target = $region25
    $region24: #{tpu_custom_call.1} parent=1 // pred_region
      %55 = dma.done [#allocation8], 256
    $region25: #{tpu_custom_call.1} parent=1 // pred_fallthru
      _
    // Predicated region
    $region26: #{tpu_custom_call.1} parent=1 // pred_check
      _
    $region27: #{tpu_custom_call.1} parent=1 // pred_check_branch
      %57 = sbr.rel (0) target = $region29
    $region28: #{tpu_custom_call.1} parent=1 // pred_region
      %58 = dma.done [#allocation8], 512
    $region29: #{tpu_custom_call.1} parent=1 // pred_fallthru
      _
    %v60 = vld [vmem:[#allocation4] sm:$0xf]
    %v61 = vld [vmem:[#allocation7] sm:$0xf]
    %v62 = vld [vmem:[#allocation7 + $0x4] sm:$0xf]
    %v63 = vld [vmem:[#allocation7 + $0x8] sm:$0xf]
    %v64 = vld [vmem:[#allocation7 + $0xc] sm:$0xf]
    %v65 = vld [vmem:[%s3] sm:$0x1]
    %v67 = vlaneseq
    %v68 = vshrl.u32 %v67, 7
    %v69 = vsub.s32 0, %v68
    %v70 = vrot.slane %v65, %v69
    %v76 = vunpack.c.l.b16 %v61
    %v77 = vunpack.c.l.b16 %v62
    %v78 = vunpack.c.l.b16 %v63
    %v79 = vunpack.c.l.b16 %v64
    %v80 = vpack.c.b16 %v77, %v76
    %v81 = vpack.c.b16 %v79, %v78
    %vm84 = vcmask 261120
    %v86 = vsel %vm84, %v60, 0
    %88 = vmatprep.subr.bf16.mxu0 0
    %89 = vmatpush1.bf16.msra.mxu0 0
    %90 = vmatprep.subr.bf16.mxu0 0
    %91 = vmatpush1.bf16.msra.mxu0 0
    %92 = vmatprep.subr.bf16.mxu0 0
    %93 = vmatpush1.bf16.msra.mxu0 0
    %94 = vmatprep.subr.bf16.mxu0 0
    %95 = vmatpush1.bf16.msra.mxu0 0
    %96 = vmatprep.subr.bf16.mxu0 0
    %97 = vmatpush1.bf16.msra.mxu0 0
    %98 = vmatprep.subr.bf16.mxu0 0
    %99 = vmatpush1.bf16.msra.mxu0 0
    %100 = vmatprep.subr.bf16.mxu0 0
    %101 = vmatpush1.bf16.msra.mxu0 %v81
    %102 = vmatprep.subr.bf16.mxu0 0
    %103 = vmatpush1.bf16.msra.mxu0 %v80
    %104 = vmatprep.subr.bf16.mxu0 0
    %105 = vmatpush2.bf16.msra.mxu0 0
    %106 = vmatprep.subr.bf16.mxu0 0
    %107 = vmatpush2.bf16.msra.mxu0 0
    %108 = vmatprep.subr.bf16.mxu0 0
    %109 = vmatpush2.bf16.msra.mxu0 0
    %110 = vmatprep.subr.bf16.mxu0 0
    %111 = vmatpush2.bf16.msra.mxu0 0
    %112 = vmatprep.subr.bf16.mxu0 0
    %113 = vmatpush2.bf16.msra.mxu0 0
    %114 = vmatprep.subr.bf16.mxu0 0
    %115 = vmatpush2.bf16.msra.mxu0 0
    %116 = vmatprep.subr.bf16.mxu0 0
    %117 = vmatpush2.bf16.msra.mxu0 0
    %118 = vmatprep.subr.bf16.mxu0 0
    %119 = vmatpush2.bf16.msra.mxu0 0
    %120 = vmatprep.mubr.bf16.mxu0 0
    %121 = vmatmul.mubr.bf16.gmra.mxu0 %v86
    %v122 = vpop.f32.mrf.mxu0
    %v123 = vadd.f32 %v70, %v122
    %v124 = vpop.f32.mrf.mxu0
    %v125 = vpop.f32.mrf.mxu0
    %v126 = vpop.f32.mrf.mxu0
    %127 = vdwg.mxu0
    %v128 = vtanh.pop %v123
    %v129 = vld [vmem:[#allocation9] sm:$0xff]
    %v130 = vld [vmem:[#allocation9 + $0x8] sm:$0xff]
    %v131 = vld [vmem:[#allocation9 + $0x10] sm:$0xff]
    %v132 = vld [vmem:[#allocation9 + $0x18] sm:$0xff]
    %v134 = vsel %vm84, %v128, 0
    %136 = vmatprep.subr.mxu0 0.0
    %137 = vmatpush1.msra.mxu0 0.0
    %138 = vmatprep.subr.mxu0 0.0
    %139 = vmatpush1.msra.mxu0 0.0
    %140 = vmatprep.subr.mxu0 0.0
    %141 = vmatpush1.msra.mxu0 0.0
    %142 = vmatprep.subr.mxu0 0.0
    %143 = vmatpush1.msra.mxu0 0.0
    %144 = vmatprep.subr.mxu0 0.0
    %145 = vmatpush1.msra.mxu0 0.0
    %146 = vmatprep.subr.mxu0 0.0
    %147 = vmatpush1.msra.mxu0 0.0
    %148 = vmatprep.subr.mxu0 0.0
    %149 = vmatpush1.msra.mxu0 0.0
    %150 = vmatprep.subr.mxu0 0.0
    %151 = vmatpush1.msra.mxu0 0.0
    %152 = vmatprep.subr.mxu0 0.0
    %153 = vmatpush1.msra.mxu0 0.0
    %154 = vmatprep.subr.mxu0 0.0
    %155 = vmatpush1.msra.mxu0 0.0
    %156 = vmatprep.subr.mxu0 0.0
    %157 = vmatpush1.msra.mxu0 0.0
    %158 = vmatprep.subr.mxu0 0.0
    %159 = vmatpush1.msra.mxu0 0.0
    %160 = vmatprep.subr.mxu0 0.0
    %161 = vmatpush1.msra.mxu0 %v132
    %162 = vmatprep.subr.mxu0 0.0
    %163 = vmatpush1.msra.mxu0 %v131
    %164 = vmatprep.subr.mxu0 0.0
    %165 = vmatpush1.msra.mxu0 %v130
    %166 = vmatprep.subr.mxu0 0.0
    %167 = vmatpush1.msra.mxu0 %v129
    %168 = vmatprep.subr.mxu0 0.0
    %169 = vmatpush2.msra.mxu0 0.0
    %170 = vmatprep.subr.mxu0 0.0
    %171 = vmatpush2.msra.mxu0 0.0
    %172 = vmatprep.subr.mxu0 0.0
    %173 = vmatpush2.msra.mxu0 0.0
    %174 = vmatprep.subr.mxu0 0.0
    %175 = vmatpush2.msra.mxu0 0.0
    %176 = vmatprep.subr.mxu0 0.0
    %177 = vmatpush2.msra.mxu0 0.0
    %178 = vmatprep.subr.mxu0 0.0
    %179 = vmatpush2.msra.mxu0 0.0
    %180 = vmatprep.subr.mxu0 0.0
    %181 = vmatpush2.msra.mxu0 0.0
    %182 = vmatprep.subr.mxu0 0.0
    %183 = vmatpush2.msra.mxu0 0.0
    %184 = vmatprep.subr.mxu0 0.0
    %185 = vmatpush2.msra.mxu0 0.0
    %186 = vmatprep.subr.mxu0 0.0
    %187 = vmatpush2.msra.mxu0 0.0
    %188 = vmatprep.subr.mxu0 0.0
    %189 = vmatpush2.msra.mxu0 0.0
    %190 = vmatprep.subr.mxu0 0.0
    %191 = vmatpush2.msra.mxu0 0.0
    %192 = vmatprep.subr.mxu0 0.0
    %193 = vmatpush2.msra.mxu0 0.0
    %194 = vmatprep.subr.mxu0 0.0
    %195 = vmatpush2.msra.mxu0 0.0
    %196 = vmatprep.subr.mxu0 0.0
    %197 = vmatpush2.msra.mxu0 0.0
    %198 = vmatprep.subr.mxu0 0.0
    %199 = vmatpush2.msra.mxu0 0.0
    %200 = vmatprep.mubr.f32.mxu0 0.0
    %201 = vmatmul.mubr.f32.gmra.mxu0 %v134
    %v202 = vpop.f32.mrf.mxu0
    %v203 = vadd.f32 0.0, %v202
    %v204 = vpop.f32.mrf.mxu0
    %205 = vdwg.mxu0
    %v206 = vlaneseq
    %v207 = vand.u32 %v206, 127
    %s208 = sld [smem:[#allocation3]]
    %v209 = vstv %s208
    %vm210 = vcmp.lt.s32.totalorder %v207, %v209
    %v211 = vsel %vm210, %v203, -1e+30
    %212 = vmax.xlane.f32.xlu0 %v211
    %v213 = vpop.xlane.xlu0 %212
    %v214 = vsub.f32 %v211, %v213
    %v215 = vmul.f32 %v214, 1.442695
    %v216 = vpow.pop %v215
    %217 = vadd.xlane.f32.xlu0 %v216
    %v218 = vpop.xlane.xlu0 %217
    %v219 = vlog2.pop %v218
    %v220 = vmul.f32 %v219, 0.6931472
    %v221 = vsub.f32 %v214, %v220
    %222 = vst [vmem:[#allocation10] sm:$0xff] %v221
    // Predicated region
    $region30: #{tpu_custom_call.1} parent=1 // pred_check
      _
    $region31: #{tpu_custom_call.1} parent=1 // pred_check_branch
      %224 = sbr.rel (0) target = $region33
    $region32: #{tpu_custom_call.1} parent=1 // pred_region
      %s226 = ssub.s32 128, 128
      %227 = vsyncadd [#allocation6], %s226
      %s229 = sshll.u32 [#allocation10], 4
      %s230 = int_to_ptr.vmem [resolvable:$true] %s229
      %232 = dma.vmem_to_hbm [thread:$0]  %s230, 128, %s5, [#allocation6]
    $region33: #{tpu_custom_call.1} parent=1 // pred_fallthru
      _
    // Predicated region
    $region34: #{tpu_custom_call.1} parent=1 // pred_check
      _
    $region35: #{tpu_custom_call.1} parent=1 // pred_check_branch
      %234 = sbr.rel (0) target = $region37
    $region36: #{tpu_custom_call.1} parent=1 // pred_region
      %235 = dma.done [#allocation6], 128
    $region37: #{tpu_custom_call.1} parent=1 // pred_fallthru
      _
    %236 = vsyncpa [#allocation5], 1
    %237 = vsyncpa [#allocation8], 1
    %238 = vsyncpa [#allocation6], 1

</llo_original>
